<compile_context>
chip_gen: v7x
topology: tpu7x:2x2x1
jax: 0.10.0
libtpu: 0.0.40
codegen_flags: <defaults>
</compile_context>

<pallas_src>
import jax
import jax.numpy as jnp
from jax.experimental import pallas as pl
from jax.experimental.pallas import tpu as pltpu

F = 20            # feature width of the module (nn.Linear(20, 20))

# Packed-parameter buffer row layout. Row-group starts are multiples of 8 so
# static slices begin on sublane-tile boundaries.
_ROW_WC = 0       # rows  0..19 : Wc  = W_lin^T @ w_fixed  (fused matmuls 1+2)
_ROW_WLT = 24     # rows 24..43 : W_lin^T
_ROW_BC = 48      # row  48     : bc  = b_lin @ w_fixed + 1
_ROW_BL = 49      # row  49     : b_lin
_N_ROWS = 56      # total rows, padded to a multiple of 8


def fixed_hidden_mlp_kernel(x_ref, p_ref, o_ref):
    x = x_ref[...]                                   # (B, F) f32

    wc = p_ref[pl.ds(_ROW_WC, F), :]                 # (F, F) fused first stage
    wlt = p_ref[pl.ds(_ROW_WLT, F), :]               # (F, F) W_lin^T
    bc = p_ref[pl.ds(_ROW_BC, 1), :]                 # (1, F) fused bias (+1 folded in)
    bl = p_ref[pl.ds(_ROW_BL, 1), :]                 # (1, F) linear bias

    # relu(linear(x) @ w_fixed + 1)  ==  relu(x @ Wc + bc)   (fused)
    h = jnp.maximum(jnp.dot(x, wc, preferred_element_type=jnp.float32) + bc, 0.0)
    # second application of the shared linear layer
    h = jnp.dot(h, wlt, preferred_element_type=jnp.float32) + bl

    # Scalar tail.  The reference loop `while sum|X| > 1: X /= 2` halves X
    # exactly n = max(0, ceil(log2(sum|X|))) times; the answer is
    # sum(X) * 2^-n (power-of-two scaling is exact in fp32).
    hsum = jnp.sum(h)
    s0 = jnp.sum(jnp.abs(h))

    bits = jax.lax.bitcast_convert_type(s0, jnp.int32)   # s0 >= 0, sign bit 0
    exp_field = (bits >> 23) & 0xFF                       # biased exponent
    mantissa = bits & 0x7FFFFF
    # s0 in (2^e, 2^(e+1)) -> ceil = e+1 ; s0 == 2^e exactly -> ceil = e
    n = exp_field - 127 + jnp.where(mantissa != 0, 1, 0)
    n = jnp.maximum(n, 0)                                 # no halving if s0 <= 1
    scale = jax.lax.bitcast_convert_type((127 - n) << 23, jnp.float32)  # 2^-n exact

    o_ref[0] = hsum * scale


def prepare_params(w_lin, b_lin, w_fixed):
    """One-time parameter prep (hoisted out of the hot path).

    Fuses the first two matmuls and packs everything into a single
    8-row-aligned f32 VMEM buffer.
    """
    w_lin = w_lin.astype(jnp.float32)
    b_lin = b_lin.astype(jnp.float32)
    w_fixed = w_fixed.astype(jnp.float32)

    wlt = w_lin.T                              # (in, out)
    wc = wlt @ w_fixed                         # fused:  x @ W^T @ w_fixed
    bc = b_lin @ w_fixed + 1.0                 # fused:  (b @ w_fixed) + 1

    packed = jnp.zeros((_N_ROWS, F), jnp.float32)
    packed = packed.at[_ROW_WC:_ROW_WC + F, :].set(wc)
    packed = packed.at[_ROW_WLT:_ROW_WLT + F, :].set(wlt)
    packed = packed.at[_ROW_BC, :].set(bc)
    packed = packed.at[_ROW_BL, :].set(b_lin)
    return packed


@jax.jit
def fixed_hidden_mlp(x, packed_params):
    B = x.shape[0]
    cost = pl.CostEstimate(
        flops=2 * (2 * B * F * F),                       # two (B,F)x(F,F) matmuls
        transcendentals=0,
        bytes_accessed=(x.size + packed_params.size) * 4 + 4,
    )
    out = pl.pallas_call(
        fixed_hidden_mlp_kernel,
        out_shape=jax.ShapeDtypeStruct((1,), jnp.float32),
        in_specs=[
            pl.BlockSpec(memory_space=pltpu.MemorySpace.VMEM),   # x
            pl.BlockSpec(memory_space=pltpu.MemorySpace.VMEM),   # packed params
        ],
        out_specs=pl.BlockSpec(memory_space=pltpu.MemorySpace.SMEM),  # scalar
        cost_estimate=cost,
    )(x, packed_params)
    return out[0]


def reference(x, w_lin, b_lin, w_fixed):
    h = x @ w_lin.T + b_lin
    h = jax.nn.relu(h @ w_fixed + 1.0)
    h = h @ w_lin.T + b_lin

    def cond(h):
        return jnp.sum(jnp.abs(h)) > 1.0

    def body(h):
        return h / 2.0

    h = jax.lax.while_loop(cond, body, h)
    return jnp.sum(h)


if __name__ == "__main__":
    key = jax.random.PRNGKey(0)
    k_x, k_wf, k_wl, k_bl = jax.random.split(key, 4)

    B = 2
    # Input: torch.rand -> uniform [0, 1)
    x = jax.random.uniform(k_x, (B, F), dtype=jnp.float32)
    # Fixed (requires_grad=False) weight: torch.rand((20, 20))
    w_fixed = jax.random.uniform(k_wf, (F, F), dtype=jnp.float32)
    # nn.Linear(20, 20) default init: U(-1/sqrt(20), 1/sqrt(20))
    bound = 1.0 / jnp.sqrt(jnp.float32(F))
    w_lin = jax.random.uniform(k_wl, (F, F), dtype=jnp.float32,
                               minval=-bound, maxval=bound)
    b_lin = jax.random.uniform(k_bl, (F,), dtype=jnp.float32,
                               minval=-bound, maxval=bound)

    # One-time parameter prep (off the hot path).
    packed = jax.block_until_ready(prepare_params(w_lin, b_lin, w_fixed))

    out = fixed_hidden_mlp(x, packed)
    out = jax.block_until_ready(out)

    ref = jax.block_until_ready(reference(x, w_lin, b_lin, w_fixed))
    # Matmul fusion changes fp32 associativity -> not bit-exact vs reference.
    assert jnp.allclose(out, ref, rtol=1e-4, atol=1e-6), (out, ref)

    print("KERNEL_OK")
</pallas_src>

<mosaic_0001>
module attributes {stable_mosaic.version = 11 : i64} {
  func.func @fixed_hidden_mlp_kernel(%arg0: memref<2x20xf32, #tpu.memory_space<vmem>>, %arg1: memref<56x20xf32, #tpu.memory_space<vmem>>, %arg2: memref<1xf32, #tpu.memory_space<smem>>) attributes {dimension_semantics = [], scalar_prefetch = 0 : i64, scratch_operands = 0 : i64, tpu.core_type = #tpu.core_type<tc>} {
    %c0 = arith.constant 0 : index
    %c0_0 = arith.constant 0 : index
    %0 = vector.load %arg0[%c0, %c0_0] : memref<2x20xf32, #tpu.memory_space<vmem>>, vector<2x20xf32>
    %c0_1 = arith.constant 0 : index
    %c0_2 = arith.constant 0 : index
    %1 = vector.load %arg1[%c0_1, %c0_2] : memref<56x20xf32, #tpu.memory_space<vmem>>, vector<20x20xf32>
    %c24 = arith.constant 24 : index
    %c0_3 = arith.constant 0 : index
    %2 = vector.load %arg1[%c24, %c0_3] : memref<56x20xf32, #tpu.memory_space<vmem>>, vector<20x20xf32>
    %c48 = arith.constant 48 : index
    %c0_4 = arith.constant 0 : index
    %3 = vector.load %arg1[%c48, %c0_4] : memref<56x20xf32, #tpu.memory_space<vmem>>, vector<1x20xf32>
    %c49 = arith.constant 49 : index
    %c0_5 = arith.constant 0 : index
    %4 = vector.load %arg1[%c49, %c0_5] : memref<56x20xf32, #tpu.memory_space<vmem>>, vector<1x20xf32>
    %cst = arith.constant dense<0.000000e+00> : vector<2x20xf32>
    %5 = tpu.matmul %0, %1, %cst {dimension_numbers = #tpu.dot_dimension_numbers<[1], [0], [0], [1], [0, 0, 1, 1], [], []>} : vector<2x20xf32>, vector<20x20xf32>, vector<2x20xf32> -> vector<2x20xf32>
    %6 = vector.broadcast %3 : vector<1x20xf32> to vector<2x20xf32>
    %7 = arith.addf %5, %6 : vector<2x20xf32>
    %cst_6 = arith.constant 0.000000e+00 : f32
    %8 = vector.broadcast %cst_6 : f32 to vector<2x20xf32>
    %9 = arith.maximumf %7, %8 : vector<2x20xf32>
    %cst_7 = arith.constant dense<0.000000e+00> : vector<2x20xf32>
    %10 = tpu.matmul %9, %2, %cst_7 {dimension_numbers = #tpu.dot_dimension_numbers<[1], [0], [0], [1], [0, 0, 1, 1], [], []>} : vector<2x20xf32>, vector<20x20xf32>, vector<2x20xf32> -> vector<2x20xf32>
    %11 = vector.broadcast %4 : vector<1x20xf32> to vector<2x20xf32>
    %12 = arith.addf %10, %11 : vector<2x20xf32>
    %13 = vector.shape_cast %12 : vector<2x20xf32> to vector<1x2x20xf32>
    %cst_8 = arith.constant dense<0.000000e+00> : vector<1xf32>
    %14 = vector.multi_reduction <add>, %13, %cst_8 [1, 2] : vector<1x2x20xf32> to vector<1xf32>
    %15 = vector.shape_cast %14 : vector<1xf32> to vector<1x1x1xf32>
    %16 = vector.extract %15[0, 0, 0] : f32 from vector<1x1x1xf32>
    %17 = math.absf %12 : vector<2x20xf32>
    %18 = vector.shape_cast %17 : vector<2x20xf32> to vector<1x2x20xf32>
    %cst_9 = arith.constant dense<0.000000e+00> : vector<1xf32>
    %19 = vector.multi_reduction <add>, %18, %cst_9 [1, 2] : vector<1x2x20xf32> to vector<1xf32>
    %20 = vector.shape_cast %19 : vector<1xf32> to vector<1x1x1xf32>
    %21 = vector.extract %20[0, 0, 0] : f32 from vector<1x1x1xf32>
    %22 = arith.bitcast %21 : f32 to i32
    %c23_i32 = arith.constant 23 : i32
    %23 = arith.shrsi %22, %c23_i32 : i32
    %c255_i32 = arith.constant 255 : i32
    %24 = arith.andi %23, %c255_i32 : i32
    %c8388607_i32 = arith.constant 8388607 : i32
    %25 = arith.andi %22, %c8388607_i32 : i32
    %c127_i32 = arith.constant 127 : i32
    %26 = arith.subi %24, %c127_i32 : i32
    %c0_i32 = arith.constant 0 : i32
    %27 = arith.cmpi ne, %25, %c0_i32 : i32
    %c1_i32 = arith.constant 1 : i32
    %c0_i32_10 = arith.constant 0 : i32
    %28 = arith.select %27, %c1_i32, %c0_i32_10 : i32
    %29 = arith.addi %26, %28 : i32
    %c0_i32_11 = arith.constant 0 : i32
    %30 = arith.maxsi %29, %c0_i32_11 : i32
    %c127_i32_12 = arith.constant 127 : i32
    %31 = arith.subi %c127_i32_12, %30 : i32
    %c23_i32_13 = arith.constant 23 : i32
    %32 = arith.shli %31, %c23_i32_13 : i32
    %33 = arith.bitcast %32 : i32 to f32
    %34 = arith.mulf %16, %33 : f32
    %c0_14 = arith.constant 0 : index
    %35 = memref.load %arg2[%c0_14] : memref<1xf32, #tpu.memory_space<smem>>
    memref.store %34, %arg2[%c0_14] : memref<1xf32, #tpu.memory_space<smem>>
    return
  }
}

</mosaic_0001>

<llo_original>
// kernel: fixed_hidden_mlp.1
$region0: #{fixed_hidden_mlp.1}
  #allocation0 [shape = 'u32[]', space=smem, size = 0x4, offset = 0x4, fixed_abs, tag = 'smem constant byte address 0x4 - core index']
  #allocation1 [shape = 'u32[144,128]{1,0:T(1,128)}', space=vmem, size = 0x12000, scoped, tag = 'internal scratch']
  %s0 = inlined_call_operand.vmem [shape: f32[2,20], index: 0, kind: input, shape index: {}]
  %s1 = inlined_call_operand.vmem [shape: f32[56,20], index: 1, kind: input, shape index: {}]
  %s2 = inlined_call_operand.hbm [shape: f32[1], index: 2, kind: output, shape index: {}]
  %s3 = sld [smem:[#allocation0]]
  $region18: #{fixed_hidden_mlp.1} parent=0
    _
  %s5 = ssub.s32 1, %s3
  %s6 = scalar_select 0, %s5, %s3
  $region1: #{fixed_hidden_mlp.1} parent=0
    #allocation2 [shape = 'u8[512]{0}', space=smem, size = 0x200, scoped, tag = 'output window, operand 0, single buffered']
    #allocation3 [shape = 's32[1]{0}', space=sflag, size = 0x4, scoped, tag = 'scoped memory for fixed_hidden_mlp.1']
    %7 = vsyncpa [#allocation3], 0
    // Predicated region
    $region2: #{fixed_hidden_mlp.1} parent=1 // pred_check
      _
    $region3: #{fixed_hidden_mlp.1} parent=1 // pred_check_branch
      %9 = sbr.rel (0) target = $region5
    $region4: #{fixed_hidden_mlp.1} parent=1 // pred_region
      _
    $region5: #{fixed_hidden_mlp.1} parent=1 // pred_fallthru
      _
    // Predicated region
    $region6: #{fixed_hidden_mlp.1} parent=1 // pred_check
      _
    $region7: #{fixed_hidden_mlp.1} parent=1 // pred_check_branch
      %11 = sbr.rel (0) target = $region9
    $region8: #{fixed_hidden_mlp.1} parent=1 // pred_region
      _
    $region9: #{fixed_hidden_mlp.1} parent=1 // pred_fallthru
      _
    %v12 = vld [vmem:[%s0] sm:$0x3]
    %v13 = vld [vmem:[%s1] sm:$0xff]
    %v14 = vld [vmem:[%s1 + $0x8] sm:$0xff]
    %v15 = vld [vmem:[%s1 + $0x10] sm:$0xf]
    %v16 = vld [vmem:[%s1 + $0x18] sm:$0xff]
    %v17 = vld [vmem:[%s1 + $0x20] sm:$0xff]
    %v18 = vld [vmem:[%s1 + $0x28] sm:$0xf]
    %v19 = vld [vmem:[%s1 + $0x30] sm:$0x1]
    %v20 = vld [vmem:[%s1 + $0x31] sm:$0x1]
    %v21 = vlaneseq
    %v22 = vshrl.u32 %v21, 7
    %v23 = vsub.s32 0, %v22
    %v24 = vrot.slane %v19, %v23
    %vm25 = vcmask 162816
    %v27 = vsel %vm25, %v12, 0
    %vm29 = vcmask 1043456
    %v31 = vsel %vm29, %v15, 0
    %33 = vmatprep.subr.mxu0 0.0
    %34 = vmatpush1.msra.mxu0 %v13
    %35 = vmatprep.subr.mxu0 0.0
    %36 = vmatpush1.msra.mxu0 %v14
    %37 = vmatprep.subr.mxu0 0.0
    %38 = vmatpush1.msra.mxu0 %v31
    %39 = vmatprep.subr.mxu0 0.0
    %40 = vmatpush1.msra.mxu0 0.0
    %41 = vmatprep.subr.mxu0 0.0
    %42 = vmatpush1.msra.mxu0 0.0
    %43 = vmatprep.subr.mxu0 0.0
    %44 = vmatpush1.msra.mxu0 0.0
    %45 = vmatprep.subr.mxu0 0.0
    %46 = vmatpush1.msra.mxu0 0.0
    %47 = vmatprep.subr.mxu0 0.0
    %48 = vmatpush1.msra.mxu0 0.0
    %49 = vmatprep.subr.mxu0 0.0
    %50 = vmatpush1.msra.mxu0 0.0
    %51 = vmatprep.subr.mxu0 0.0
    %52 = vmatpush1.msra.mxu0 0.0
    %53 = vmatprep.subr.mxu0 0.0
    %54 = vmatpush1.msra.mxu0 0.0
    %55 = vmatprep.subr.mxu0 0.0
    %56 = vmatpush1.msra.mxu0 0.0
    %57 = vmatprep.subr.mxu0 0.0
    %58 = vmatpush1.msra.mxu0 0.0
    %59 = vmatprep.subr.mxu0 0.0
    %60 = vmatpush1.msra.mxu0 0.0
    %61 = vmatprep.subr.mxu0 0.0
    %62 = vmatpush1.msra.mxu0 0.0
    %63 = vmatprep.subr.mxu0 0.0
    %64 = vmatpush1.msra.mxu0 0.0
    %65 = vmatprep.subr.mxu0 0.0
    %66 = vmatpush1.msra.mxu0 0.0
    %67 = vmatprep.subr.mxu0 0.0
    %68 = vmatpush1.msra.mxu0 0.0
    %69 = vmatprep.subr.mxu0 0.0
    %70 = vmatpush1.msra.mxu0 0.0
    %71 = vmatprep.subr.mxu0 0.0
    %72 = vmatpush1.msra.mxu0 0.0
    %73 = vmatprep.subr.mxu0 0.0
    %74 = vmatpush1.msra.mxu0 0.0
    %75 = vmatprep.subr.mxu0 0.0
    %76 = vmatpush1.msra.mxu0 0.0
    %77 = vmatprep.subr.mxu0 0.0
    %78 = vmatpush1.msra.mxu0 0.0
    %79 = vmatprep.subr.mxu0 0.0
    %80 = vmatpush1.msra.mxu0 0.0
    %81 = vmatprep.subr.mxu0 0.0
    %82 = vmatpush1.msra.mxu0 0.0
    %83 = vmatprep.subr.mxu0 0.0
    %84 = vmatpush1.msra.mxu0 0.0
    %85 = vmatprep.subr.mxu0 0.0
    %86 = vmatpush1.msra.mxu0 0.0
    %87 = vmatprep.subr.mxu0 0.0
    %88 = vmatpush1.msra.mxu0 0.0
    %89 = vmatprep.subr.mxu0 0.0
    %90 = vmatpush1.msra.mxu0 0.0
    %91 = vmatprep.subr.mxu0 0.0
    %92 = vmatpush1.msra.mxu0 0.0
    %93 = vmatprep.subr.mxu0 0.0
    %94 = vmatpush1.msra.mxu0 0.0
    %95 = vmatprep.subr.mxu0 0.0
    %96 = vmatpush1.msra.mxu0 0.0
    %97 = vmatprep.mubr.f32.mxu0 0.0
    %98 = vmatmul.mubr.f32.gmra.mrb[0].mxu0 %v27
    %v99 = vpop.f32.mrb[0].mxu0
    %v100 = vadd.f32 %v24, %v99
    %v101 = vpop.f32.mrb[0].mxu0
    %102 = vdwg.mxu0
    %v103 = vmax.f32 %v100, 0.0
    %v104 = vlaneseq
    %v105 = vshrl.u32 %v104, 7
    %v106 = vsub.s32 0, %v105
    %v107 = vrot.slane %v20, %v106
    %v109 = vsel %vm25, %v103, 0
    %v112 = vsel %vm29, %v18, 0
    %114 = vmatprep.subr.mxu0 0.0
    %115 = vmatpush1.msra.mxu0 %v16
    %116 = vmatprep.subr.mxu0 0.0
    %117 = vmatpush1.msra.mxu0 %v17
    %118 = vmatprep.subr.mxu0 0.0
    %119 = vmatpush1.msra.mxu0 %v112
    %120 = vmatprep.subr.mxu0 0.0
    %121 = vmatpush1.msra.mxu0 0.0
    %122 = vmatprep.subr.mxu0 0.0
    %123 = vmatpush1.msra.mxu0 0.0
    %124 = vmatprep.subr.mxu0 0.0
    %125 = vmatpush1.msra.mxu0 0.0
    %126 = vmatprep.subr.mxu0 0.0
    %127 = vmatpush1.msra.mxu0 0.0
    %128 = vmatprep.subr.mxu0 0.0
    %129 = vmatpush1.msra.mxu0 0.0
    %130 = vmatprep.subr.mxu0 0.0
    %131 = vmatpush1.msra.mxu0 0.0
    %132 = vmatprep.subr.mxu0 0.0
    %133 = vmatpush1.msra.mxu0 0.0
    %134 = vmatprep.subr.mxu0 0.0
    %135 = vmatpush1.msra.mxu0 0.0
    %136 = vmatprep.subr.mxu0 0.0
    %137 = vmatpush1.msra.mxu0 0.0
    %138 = vmatprep.subr.mxu0 0.0
    %139 = vmatpush1.msra.mxu0 0.0
    %140 = vmatprep.subr.mxu0 0.0
    %141 = vmatpush1.msra.mxu0 0.0
    %142 = vmatprep.subr.mxu0 0.0
    %143 = vmatpush1.msra.mxu0 0.0
    %144 = vmatprep.subr.mxu0 0.0
    %145 = vmatpush1.msra.mxu0 0.0
    %146 = vmatprep.subr.mxu0 0.0
    %147 = vmatpush1.msra.mxu0 0.0
    %148 = vmatprep.subr.mxu0 0.0
    %149 = vmatpush1.msra.mxu0 0.0
    %150 = vmatprep.subr.mxu0 0.0
    %151 = vmatpush1.msra.mxu0 0.0
    %152 = vmatprep.subr.mxu0 0.0
    %153 = vmatpush1.msra.mxu0 0.0
    %154 = vmatprep.subr.mxu0 0.0
    %155 = vmatpush1.msra.mxu0 0.0
    %156 = vmatprep.subr.mxu0 0.0
    %157 = vmatpush1.msra.mxu0 0.0
    %158 = vmatprep.subr.mxu0 0.0
    %159 = vmatpush1.msra.mxu0 0.0
    %160 = vmatprep.subr.mxu0 0.0
    %161 = vmatpush1.msra.mxu0 0.0
    %162 = vmatprep.subr.mxu0 0.0
    %163 = vmatpush1.msra.mxu0 0.0
    %164 = vmatprep.subr.mxu0 0.0
    %165 = vmatpush1.msra.mxu0 0.0
    %166 = vmatprep.subr.mxu0 0.0
    %167 = vmatpush1.msra.mxu0 0.0
    %168 = vmatprep.subr.mxu0 0.0
    %169 = vmatpush1.msra.mxu0 0.0
    %170 = vmatprep.subr.mxu0 0.0
    %171 = vmatpush1.msra.mxu0 0.0
    %172 = vmatprep.subr.mxu0 0.0
    %173 = vmatpush1.msra.mxu0 0.0
    %174 = vmatprep.subr.mxu0 0.0
    %175 = vmatpush1.msra.mxu0 0.0
    %176 = vmatprep.subr.mxu0 0.0
    %177 = vmatpush1.msra.mxu0 0.0
    %178 = vmatprep.mubr.f32.mxu0 0.0
    %179 = vmatmul.mubr.f32.gmra.mrb[0].mxu0 %v109
    %v180 = vpop.f32.mrb[0].mxu0
    %v181 = vadd.f32 %v107, %v180
    %v182 = vpop.f32.mrb[0].mxu0
    %183 = vdwg.mxu0
    %vm184 = vcmask 156672
    %v185 = vsel %vm184, %v181, 0.0
    %186 = vadd.xlane.f32.xlu0 %v185
    %v187 = vpop.xlane.xlu0 %186
    %v188 = vrot.slane %v187, 4
    %v189 = vadd.f32 %v187, %v188
    %v190 = vrot.slane %v189, 2
    %v191 = vadd.f32 %v189, %v190
    %v192 = vrot.slane %v191, 1
    %v193 = vadd.f32 %v191, %v192
    %s194 = vtos %v193
    %v195 = vand.u32 2147483647, %v181
    %v196 = vsel %vm184, %v195, 0.0
    %197 = vadd.xlane.f32.xlu0 %v196
    %v198 = vpop.xlane.xlu0 %197
    %v199 = vrot.slane %v198, 4
    %v200 = vadd.f32 %v198, %v199
    %v201 = vrot.slane %v200, 2
    %v202 = vadd.f32 %v200, %v201
    %v203 = vrot.slane %v202, 1
    %v204 = vadd.f32 %v202, %v203
    %s205 = vtos %v204
    %s207 = sshra.s32 %s205, 23
    %s208 = sand.u32 %s207, 255
    %s209 = sand.u32 %s205, 8388607
    %s210 = ssub.s32 %s208, 127
    %p211 = scmp.ne.s32.totalorder %s209, 0
    %s212 = scalar_select %p211, 1, 0
    %s213 = sadd.s32 %s210, %s212
    %p214 = scmp.gt.s32.totalorder %s213, 0
    %s215 = scalar_select %p214, %s213, 0
    %s216 = ssub.s32 127, %s215
    %s217 = sshll.u32 %s216, 23
    %s219 = smul.f32 %s194, %s217
    %s220 = scalar_lea.smem [#allocation2], 0
    %221 = sst [smem:[%s220]] %s219
    // Predicated region
    $region10: #{fixed_hidden_mlp.1} parent=1 // pred_check
      _
    $region11: #{fixed_hidden_mlp.1} parent=1 // pred_check_branch
      %223 = sbr.rel (0) target = $region13
    $region12: #{fixed_hidden_mlp.1} parent=1 // pred_region
      %s225 = ssub.s32 16, 16
      %226 = vsyncadd [#allocation3], %s225
      %229 = dma.smem_to_hbm [#allocation2], 16, %s2, [#allocation3]
    $region13: #{fixed_hidden_mlp.1} parent=1 // pred_fallthru
      _
    // Predicated region
    $region14: #{fixed_hidden_mlp.1} parent=1 // pred_check
      _
    $region15: #{fixed_hidden_mlp.1} parent=1 // pred_check_branch
      %231 = sbr.rel (0) target = $region17
    $region16: #{fixed_hidden_mlp.1} parent=1 // pred_region
      %232 = dma.done [#allocation3], 16
    $region17: #{fixed_hidden_mlp.1} parent=1 // pred_fallthru
      _
    %233 = sfence
    %234 = vsyncpa [#allocation3], 1

</llo_original>
